<compile_context>
chip_gen: v7x
topology: tpu7x:2x2x1
jax: 0.10.0
libtpu: 0.0.40
codegen_flags: <defaults>
</compile_context>

<pallas_src>
import functools

import jax
import jax.numpy as jnp
from jax.experimental import pallas as pl
from jax.experimental.pallas import tpu as pltpu


LANE = 128      # TPU lane width: keep the output M axis lane-dense.
TM_MAX = 512    # max M (lane) tile per grid step; bounds VMEM even on v7x.


def _round_up(x, m):
    return ((x + m - 1) // m) * m


# ----------------------------------------------------------------------------
# Pallas kernel: transposed fused GEMM
#   out(N, TM) = W(N, K) @ patchesT(K, TM) + bias(N, 1)  [-> LeakyReLU(0.01)]
# ----------------------------------------------------------------------------
def _gemm_t_kernel(w_ref, x_ref, b_ref, o_ref, *, apply_leaky, slope):
    acc = jnp.dot(w_ref[...], x_ref[...], preferred_element_type=jnp.float32)
    acc = acc + b_ref[...]                       # (N, 1) broadcasts over lanes
    if apply_leaky:
        acc = jnp.where(acc >= 0.0, acc, slope * acc)
    o_ref[...] = acc.astype(o_ref.dtype)


def _conv_gemm_t(wm, pt, bcol, apply_leaky, out_dtype, slope=0.01):
    """wm: (N, K) bf16, pt: (K, M) bf16, bcol: (N, 1) f32 -> (N, Mpad) out_dtype."""
    N, K = wm.shape
    K2, M = pt.shape
    assert K == K2

    # Tile the (large) M axis and keep it on lanes so stores are unmasked.
    if M >= TM_MAX:
        tm = TM_MAX
    else:
        tm = max(LANE, _round_up(M, LANE))
    m_pad = _round_up(M, tm)
    if m_pad != M:
        pt = jnp.pad(pt, ((0, 0), (0, m_pad - M)))
    grid_m = m_pad // tm

    kernel = functools.partial(_gemm_t_kernel, apply_leaky=apply_leaky,
                               slope=slope)
    out_bytes = N * m_pad * jnp.dtype(out_dtype).itemsize
    cost = pl.CostEstimate(
        flops=2 * N * K * m_pad,
        transcendentals=0,
        bytes_accessed=int(2 * (N * K + K * m_pad) + 4 * N + out_bytes),
    )
    return pl.pallas_call(
        kernel,
        out_shape=jax.ShapeDtypeStruct((N, m_pad), out_dtype),
        grid=(grid_m,),
        in_specs=[
            pl.BlockSpec((N, K), lambda i: (0, 0)),    # weights resident
            pl.BlockSpec((K, tm), lambda i: (0, i)),   # patch tile, pipelined
            pl.BlockSpec((N, 1), lambda i: (0, 0)),    # bias resident
        ],
        out_specs=pl.BlockSpec((N, tm), lambda i: (0, i)),
        compiler_params=pltpu.CompilerParams(
            dimension_semantics=("parallel",),          # megacore split over M
            vmem_limit_bytes=32 * 1024 * 1024,          # safe within v7x 64 MiB
        ),
        cost_estimate=cost,
    )(wm, pt, bcol)


# ----------------------------------------------------------------------------
# Pallas kernel: fused heads (conv1 + conv2 share the same feature map)
# ----------------------------------------------------------------------------
def _heads_kernel(w1_ref, p1_ref, w2_ref, p2_ref, o1_ref, o2_ref):
    o1_ref[...] = jnp.dot(w1_ref[...], p1_ref[...],
                          preferred_element_type=jnp.float32)
    o2_ref[...] = jnp.dot(w2_ref[...], p2_ref[...],
                          preferred_element_type=jnp.float32)


# ----------------------------------------------------------------------------
# im2col in channel-major layout (C, B, H, W): strided slices + stack only.
# K ordering (ic, kh, kw) matches weight.reshape(OC, -1).
# ----------------------------------------------------------------------------
def _im2col_cm(act, KH, KW, stride, padding):
    C, B, H, W = act.shape
    OH = (H + 2 * padding - KH) // stride + 1
    OW = (W + 2 * padding - KW) // stride + 1
    if padding > 0:
        act = jnp.pad(act, ((0, 0), (0, 0),
                            (padding, padding), (padding, padding)))
    wins = []
    for kh in range(KH):
        for kw in range(KW):
            wins.append(act[:, :, kh:kh + stride * OH:stride,
                                  kw:kw + stride * OW:stride])  # (C, B, OH, OW)
    pt = jnp.stack(wins, axis=1)                    # (C, KH*KW, B, OH, OW)
    pt = pt.reshape(C * KH * KW, B * OH * OW)       # (K, M), both merges contiguous
    return pt, OH, OW


# ----------------------------------------------------------------------------
# Conv2d in channel-major layout (C, B, H, W) -> (OC, B, OH, OW)
# ----------------------------------------------------------------------------
def conv2d_cm(act, w, b, stride, padding, apply_leaky,
              out_dtype=jnp.bfloat16):
    OC, IC, KH, KW = w.shape
    assert act.shape[0] == IC
    B = act.shape[1]

    pt, OH, OW = _im2col_cm(act.astype(jnp.bfloat16), KH, KW, stride, padding)
    wm = w.reshape(OC, IC * KH * KW).astype(jnp.bfloat16)      # (N, K)
    if b is None:
        bcol = jnp.zeros((OC, 1), jnp.float32)
    else:
        bcol = b.reshape(OC, 1).astype(jnp.float32)

    M = pt.shape[1]
    out_t = _conv_gemm_t(wm, pt, bcol, apply_leaky, out_dtype)  # (OC, Mpad)
    out_t = out_t[:, :M]
    return out_t.reshape(OC, B, OH, OW)


def heads_fused(h, w1, w2):
    """Both heads read the same h (C, B, HH, WW); one pallas_call, two outputs."""
    C, B, HH, WW = h.shape
    hb = h.astype(jnp.bfloat16)

    p1t, oh1, ow1 = _im2col_cm(hb, 3, 3, stride=1, padding=1)     # (C*9, B*HH*WW)
    ks = w2.shape[2]
    p2t, oh2, ow2 = _im2col_cm(hb, ks, ks, stride=1, padding=0)   # (C*ks*ks, B)
    assert oh1 == HH and ow1 == WW and oh2 == 1 and ow2 == 1

    w1m = w1.reshape(1, -1).astype(jnp.bfloat16)                  # (1, C*9)
    w2m = w2.reshape(w2.shape[0], -1).astype(jnp.bfloat16)        # (c_dim, C*ks*ks)

    m1, m2 = p1t.shape[1], p2t.shape[1]
    m1p, m2p = _round_up(m1, LANE), _round_up(m2, LANE)
    p1t = jnp.pad(p1t, ((0, 0), (0, m1p - m1)))
    p2t = jnp.pad(p2t, ((0, 0), (0, m2p - m2)))

    k1, k2 = w1m.shape[1], w2m.shape[1]
    n2 = w2m.shape[0]
    o1, o2 = pl.pallas_call(
        _heads_kernel,
        out_shape=(jax.ShapeDtypeStruct((1, m1p), jnp.float32),
                   jax.ShapeDtypeStruct((n2, m2p), jnp.float32)),
        grid=(1,),
        in_specs=[
            pl.BlockSpec((1, k1), lambda i: (0, 0)),
            pl.BlockSpec((k1, m1p), lambda i: (0, 0)),
            pl.BlockSpec((n2, k2), lambda i: (0, 0)),
            pl.BlockSpec((k2, m2p), lambda i: (0, 0)),
        ],
        out_specs=(pl.BlockSpec((1, m1p), lambda i: (0, 0)),
                   pl.BlockSpec((n2, m2p), lambda i: (0, 0))),
        compiler_params=pltpu.CompilerParams(
            dimension_semantics=("arbitrary",)),
    )(w1m, p1t, w2m, p2t)
    return o1[:, :m1], o2[:, :m2]


# ----------------------------------------------------------------------------
# Discriminator (PatchGAN) forward
# ----------------------------------------------------------------------------
def init_discriminator_params(key, image_size=16, conv_dim=8, c_dim=5,
                              repeat_num=3):
    """Deterministic synthetic params with the same shapes as the nn.Module."""
    params = {"main": []}
    scale = 0.05

    def nrm(k, shape):
        return jax.random.normal(k, shape, dtype=jnp.float32) * scale

    keys = jax.random.split(key, 2 * repeat_num + 2)
    ki = 0

    in_c, out_c = 3, conv_dim
    params["main"].append(
        {"w": nrm(keys[ki], (out_c, in_c, 4, 4)),
         "b": nrm(keys[ki + 1], (out_c,))})
    ki += 2
    curr_dim = conv_dim
    for _ in range(1, repeat_num):
        params["main"].append(
            {"w": nrm(keys[ki], (curr_dim * 2, curr_dim, 4, 4)),
             "b": nrm(keys[ki + 1], (curr_dim * 2,))})
        ki += 2
        curr_dim *= 2

    kernel_size = image_size // (2 ** repeat_num)
    params["conv1_w"] = nrm(keys[ki], (1, curr_dim, 3, 3))               # no bias
    params["conv2_w"] = nrm(keys[ki + 1],
                            (c_dim, curr_dim, kernel_size, kernel_size))  # no bias
    return params


def discriminator_forward(params, x):
    """x: (B, 3, H, W) NCHW. Returns (out_src, out_cls) matching PyTorch."""
    # Single layout change at the input: channel-major (C, B, H, W).
    h = jnp.transpose(x, (1, 0, 2, 3))
    for layer in params["main"]:
        h = conv2d_cm(h, layer["w"], layer["b"], stride=2, padding=1,
                      apply_leaky=True)                     # (OC, B, OH, OW)

    out_src_t, out_cls_t = heads_fused(h, params["conv1_w"], params["conv2_w"])

    _, B, HH, WW = h.shape
    out_src = jnp.transpose(out_src_t.reshape(1, B, HH, WW), (1, 0, 2, 3))
    out_cls = out_cls_t.T                                   # (B, c_dim)
    return out_src, out_cls


if __name__ == "__main__":
    # Small shapes consistent with the module:
    #   image_size=16, conv_dim=8, c_dim=5, repeat_num=3
    #   -> kernel_size = 16 / 2^3 = 2, final feature map (B, 32, 2, 2)
    B, image_size, conv_dim, c_dim, repeat_num = 2, 16, 8, 5, 3

    key = jax.random.PRNGKey(0)
    pkey, xkey = jax.random.split(key)

    params = init_discriminator_params(
        pkey, image_size=image_size, conv_dim=conv_dim,
        c_dim=c_dim, repeat_num=repeat_num)

    x = jax.random.normal(xkey, (B, 3, image_size, image_size),
                          dtype=jnp.float32)

    out_src, out_cls = discriminator_forward(params, x)
    out_src = jax.block_until_ready(out_src)
    out_cls = jax.block_until_ready(out_cls)

    assert out_src.shape == (B, 1, image_size // (2 ** repeat_num),
                             image_size // (2 ** repeat_num)), out_src.shape
    assert out_cls.shape == (B, c_dim), out_cls.shape
    print("KERNEL_OK")
</pallas_src>

<mosaic_0001>
module attributes {stable_mosaic.version = 11 : i64} {
  func.func @_gemm_t_kernel(%arg0: i32, %arg1: memref<8x48xbf16, #tpu.memory_space<vmem>>, %arg2: memref<48x128xbf16, #tpu.memory_space<vmem>>, %arg3: memref<8x1xf32, #tpu.memory_space<vmem>>, %arg4: memref<8x128xbf16, #tpu.memory_space<vmem>>) attributes {dimension_semantics = [#tpu.dimension_semantics<parallel>], iteration_bounds = array<i64: 1>, scalar_prefetch = 0 : i64, scratch_operands = 0 : i64, tpu.core_type = #tpu.core_type<tc>, window_params = [{pipeline_mode = #tpu.pipeline_mode<synchronous>, transform_indices = @transform_0, window_bounds = array<i64: 8, 48>}, {transform_indices = @transform_1, window_bounds = array<i64: 48, 128>}, {pipeline_mode = #tpu.pipeline_mode<synchronous>, transform_indices = @transform_2, window_bounds = array<i64: 8, 1>}, {transform_indices = @transform_3, window_bounds = array<i64: 8, 128>}]} {
    %c0 = arith.constant 0 : index
    %c0_0 = arith.constant 0 : index
    %0 = vector.load %arg1[%c0, %c0_0] : memref<8x48xbf16, #tpu.memory_space<vmem>>, vector<8x48xbf16>
    %c0_1 = arith.constant 0 : index
    %c0_2 = arith.constant 0 : index
    %1 = vector.load %arg2[%c0_1, %c0_2] : memref<48x128xbf16, #tpu.memory_space<vmem>>, vector<48x128xbf16>
    %cst = arith.constant dense<0.000000e+00> : vector<8x128xf32>
    %2 = tpu.matmul %0, %1, %cst {dimension_numbers = #tpu.dot_dimension_numbers<[1], [0], [0], [1], [0, 0, 1, 1], [], []>} : vector<8x48xbf16>, vector<48x128xbf16>, vector<8x128xf32> -> vector<8x128xf32>
    %c0_3 = arith.constant 0 : index
    %c0_4 = arith.constant 0 : index
    %3 = vector.load %arg3[%c0_3, %c0_4] : memref<8x1xf32, #tpu.memory_space<vmem>>, vector<8x1xf32>
    %4 = vector.broadcast %3 : vector<8x1xf32> to vector<8x128xf32>
    %5 = arith.addf %2, %4 : vector<8x128xf32>
    %cst_5 = arith.constant 0.000000e+00 : f32
    %6 = vector.broadcast %cst_5 : f32 to vector<8x128xf32>
    %7 = arith.cmpf oge, %5, %6 : vector<8x128xf32>
    %cst_6 = arith.constant 0.00999999977 : f32
    %8 = vector.broadcast %cst_6 : f32 to vector<8x128xf32>
    %9 = arith.mulf %8, %5 : vector<8x128xf32>
    %10 = arith.select %7, %5, %9 : vector<8x128xi1>, vector<8x128xf32>
    %11 = arith.truncf %10 : vector<8x128xf32> to vector<8x128xbf16>
    %c0_7 = arith.constant 0 : index
    %c0_8 = arith.constant 0 : index
    %12 = vector.load %arg4[%c0_7, %c0_8] : memref<8x128xbf16, #tpu.memory_space<vmem>>, vector<8x128xbf16>
    tpu.vector_store %arg4[%c0_7, %c0_8], %11 {strides = array<i32>} : memref<8x128xbf16, #tpu.memory_space<vmem>>, vector<8x128xbf16>,
    return
  }
  func.func @transform_0(%arg0: i32) -> (i32, i32) {
    %c0_i32 = arith.constant 0 : i32
    %c0_i32_0 = arith.constant 0 : i32
    %c0_i32_1 = arith.constant 0 : i32
    return %c0_i32, %c0_i32_0 : i32, i32
  }
  func.func @transform_1(%arg0: i32) -> (i32, i32) {
    %c0_i32 = arith.constant 0 : i32
    %c0_i32_0 = arith.constant 0 : i32
    return %c0_i32, %arg0 : i32, i32
  }
  func.func @transform_2(%arg0: i32) -> (i32, i32) {
    %c0_i32 = arith.constant 0 : i32
    %c0_i32_0 = arith.constant 0 : i32
    %c0_i32_1 = arith.constant 0 : i32
    return %c0_i32, %c0_i32_0 : i32, i32
  }
  func.func @transform_3(%arg0: i32) -> (i32, i32) {
    %c0_i32 = arith.constant 0 : i32
    %c0_i32_0 = arith.constant 0 : i32
    return %c0_i32, %arg0 : i32, i32
  }
}

</mosaic_0001>

<llo_original>
// kernel: tpu_custom_call.1
$region0: #{tpu_custom_call.1}
  #allocation0 [shape = 'u32[]', space=smem, size = 0x4, offset = 0x4, fixed_abs, tag = 'smem constant byte address 0x4 - core index']
  #allocation1 [shape = 'u32[144,128]{1,0:T(1,128)}', space=vmem, size = 0x12000, scoped, tag = 'internal scratch']
  %s0 = inlined_call_operand.vmem [shape: bf16[8,48], index: 0, kind: input, shape index: {}]
  %s1 = inlined_call_operand.hbm [shape: bf16[48,128], index: 1, kind: input, shape index: {}]
  %s2 = inlined_call_operand.vmem [shape: f32[8,1], index: 2, kind: input, shape index: {}]
  %s3 = inlined_call_operand.hbm [shape: bf16[8,128], index: 3, kind: output, shape index: {}]
  %s4 = sld [smem:[#allocation0]]
  $region26: #{tpu_custom_call.1} parent=0
    _
  %s6 = ssub.s32 1, %s4
  %s7 = scalar_select 0, %s6, %s4
  $region1: #{tpu_custom_call.1} parent=0
    #allocation2 [shape = 'u8[12288]{0}', space=vmem, size = 0x3000, scoped, tag = 'input window, operand 1, single buffered']
    #allocation3 [shape = 's32[1]{0}', space=sflag, size = 0x4, scoped, tag = 'scoped memory for tpu_custom_call.1']
    #allocation4 [shape = 's32[1]{0}', space=sflag, size = 0x4, scoped, tag = 'scoped memory for tpu_custom_call.1']
    #allocation5 [shape = 'u8[2048]{0}', space=vmem, size = 0x800, scoped, tag = 'output window, operand 0, single buffered']
    %8 = vsyncpa [#allocation3], 0
    %9 = vsyncpa [#allocation4], 0
    // Predicated region
    $region2: #{tpu_custom_call.1} parent=1 // pred_check
      _
    $region3: #{tpu_custom_call.1} parent=1 // pred_check_branch
      %11 = sbr.rel (0) target = $region5
    $region4: #{tpu_custom_call.1} parent=1 // pred_region
      _
    $region5: #{tpu_custom_call.1} parent=1 // pred_fallthru
      _
    // Predicated region
    $region6: #{tpu_custom_call.1} parent=1 // pred_check
      _
    $region7: #{tpu_custom_call.1} parent=1 // pred_check_branch
      %13 = sbr.rel (0) target = $region9
    $region8: #{tpu_custom_call.1} parent=1 // pred_region
      %s15 = ssub.s32 384, 384
      %16 = vsyncadd [#allocation3], %s15
      %s17 = sshll.u32 [#allocation2], 4
      %s18 = int_to_ptr.vmem [resolvable:$true] %s17
      %23 = dma.hbm_to_vmem [thread:$0]  %s1, 384, %s18, [#allocation3], 64, 64, 4
    $region9: #{tpu_custom_call.1} parent=1 // pred_fallthru
      _
    // Predicated region
    $region10: #{tpu_custom_call.1} parent=1 // pred_check
      _
    $region11: #{tpu_custom_call.1} parent=1 // pred_check_branch
      %25 = sbr.rel (0) target = $region13
    $region12: #{tpu_custom_call.1} parent=1 // pred_region
      _
    $region13: #{tpu_custom_call.1} parent=1 // pred_fallthru
      _
    // Predicated region
    $region14: #{tpu_custom_call.1} parent=1 // pred_check
      _
    $region15: #{tpu_custom_call.1} parent=1 // pred_check_branch
      %27 = sbr.rel (0) target = $region17
    $region16: #{tpu_custom_call.1} parent=1 // pred_region
      %28 = dma.done [#allocation3], 384
    $region17: #{tpu_custom_call.1} parent=1 // pred_fallthru
      _
    %v30 = vld [vmem:[%s0] sm:$0xf]
    %v31 = vld [vmem:[#allocation2] sm:$0xf]
    %v32 = vld [vmem:[#allocation2 + $0x4] sm:$0xf]
    %v33 = vld [vmem:[#allocation2 + $0x8] sm:$0xf]
    %v34 = vld [vmem:[#allocation2 + $0xc] sm:$0xf]
    %v35 = vld [vmem:[#allocation2 + $0x10] sm:$0xf]
    %v36 = vld [vmem:[#allocation2 + $0x14] sm:$0xf]
    %v37 = vld [vmem:[%s2] sm:$0xff]
    %39 = vset.pattern.permute.xlu0 0
    %40 = vperm.xlu0 %39, %v37
    %v41 = vpop.permute.xlu0 %40
    %v49 = vunpack.c.l.b16 %v31
    %v50 = vunpack.c.l.b16 %v32
    %v51 = vunpack.c.l.b16 %v33
    %v52 = vunpack.c.l.b16 %v34
    %v53 = vunpack.c.l.b16 %v35
    %v54 = vunpack.c.l.b16 %v36
    %v55 = vpack.c.b16 %v50, %v49
    %v56 = vpack.c.b16 %v52, %v51
    %v57 = vpack.c.b16 %v54, %v53
    %vm61 = vcmask 392192
    %v63 = vsel %vm61, %v30, 0
    %65 = vmatprep.subr.bf16.mxu0 0
    %66 = vmatpush1.bf16.msra.mxu0 %v55
    %67 = vmatprep.subr.bf16.mxu0 0
    %68 = vmatpush1.bf16.msra.mxu0 %v56
    %69 = vmatprep.subr.bf16.mxu0 0
    %70 = vmatpush1.bf16.msra.mxu0 %v57
    %71 = vmatprep.subr.bf16.mxu0 0
    %72 = vmatpush1.bf16.msra.mxu0 0
    %73 = vmatprep.subr.bf16.mxu0 0
    %74 = vmatpush1.bf16.msra.mxu0 0
    %75 = vmatprep.subr.bf16.mxu0 0
    %76 = vmatpush1.bf16.msra.mxu0 0
    %77 = vmatprep.subr.bf16.mxu0 0
    %78 = vmatpush1.bf16.msra.mxu0 0
    %79 = vmatprep.subr.bf16.mxu0 0
    %80 = vmatpush1.bf16.msra.mxu0 0
    %81 = vmatprep.subr.bf16.mxu0 0
    %82 = vmatpush1.bf16.msra.mxu0 0
    %83 = vmatprep.subr.bf16.mxu0 0
    %84 = vmatpush1.bf16.msra.mxu0 0
    %85 = vmatprep.subr.bf16.mxu0 0
    %86 = vmatpush1.bf16.msra.mxu0 0
    %87 = vmatprep.subr.bf16.mxu0 0
    %88 = vmatpush1.bf16.msra.mxu0 0
    %89 = vmatprep.subr.bf16.mxu0 0
    %90 = vmatpush1.bf16.msra.mxu0 0
    %91 = vmatprep.subr.bf16.mxu0 0
    %92 = vmatpush1.bf16.msra.mxu0 0
    %93 = vmatprep.subr.bf16.mxu0 0
    %94 = vmatpush1.bf16.msra.mxu0 0
    %95 = vmatprep.subr.bf16.mxu0 0
    %96 = vmatpush1.bf16.msra.mxu0 0
    %97 = vmatprep.mubr.bf16.mxu0 0
    %98 = vmatmul.mubr.bf16.gmra.mrb[0].mxu0 %v63
    %v99 = vpop.f32.mrb[0].mxu0
    %v100 = vadd.f32 %v41, %v99
    %v101 = vpop.f32.mrb[0].mxu0
    %v102 = vpop.f32.mrb[0].mxu0
    %v103 = vpop.f32.mrb[0].mxu0
    %104 = vdwg.mxu0
    %vm105 = vcmp.ge.f32.partialorder %v100, 0.0
    %v106 = vmul.f32 %v100, 0.01
    %v107 = vsel %vm105, %v100, %v106
    %v108 = vpack.c.bf16 %v107, %v107
    %109 = vst [vmem:[#allocation5] sm:$0xf] %v108
    // Predicated region
    $region18: #{tpu_custom_call.1} parent=1 // pred_check
      _
    $region19: #{tpu_custom_call.1} parent=1 // pred_check_branch
      %111 = sbr.rel (0) target = $region21
    $region20: #{tpu_custom_call.1} parent=1 // pred_region
      %s113 = ssub.s32 64, 64
      %114 = vsyncadd [#allocation4], %s113
      %s116 = sshll.u32 [#allocation5], 4
      %s117 = int_to_ptr.vmem [resolvable:$true] %s116
      %119 = dma.vmem_to_hbm [thread:$0]  %s117, 64, %s3, [#allocation4]
    $region21: #{tpu_custom_call.1} parent=1 // pred_fallthru
      _
    // Predicated region
    $region22: #{tpu_custom_call.1} parent=1 // pred_check
      _
    $region23: #{tpu_custom_call.1} parent=1 // pred_check_branch
      %121 = sbr.rel (0) target = $region25
    $region24: #{tpu_custom_call.1} parent=1 // pred_region
      %122 = dma.done [#allocation4], 64
    $region25: #{tpu_custom_call.1} parent=1 // pred_fallthru
      _
    %123 = vsyncpa [#allocation3], 1
    %124 = vsyncpa [#allocation4], 1

</llo_original>
